<compile_context>
chip_gen: v6e
topology: v6e:2x2x1
jax: 0.10.0
libtpu: 0.0.40
codegen_flags: <defaults>
</compile_context>

<pallas_src>
import functools
import math

import jax
import jax.numpy as jnp
from jax.experimental import pallas as pl
from jax.experimental.pallas import tpu as pltpu


_LANE = 128          # minor (lane) tile granularity
_SUBLANE = 8         # second-minor (sublane) tile granularity
_EXP_CLAMP = 80.0    # |arg| clamp for exp() (f32 exp overflows near 88)
_EXP_SAFE_Z = 50.0   # guard: max |sigma*(c-shift)| + |sigma*delta/2| for exp path


def _round_up(v, m):
    return ((v + m - 1) // m) * m


def _largest_tile(total, unit, cap):
    """Largest multiple of `unit` that divides `total` and is <= cap (floor `unit`)."""
    t = min(int(cap), int(total))
    t -= t % unit
    while t > unit:
        if total % t == 0:
            return t
        t -= unit
    return unit


def _vmem_budget():
    """Returns (buffer budget bytes, vmem_limit_bytes) per chip generation."""
    try:
        cap = int(pltpu.get_tpu_info().vmem_capacity_bytes)
    except Exception:                      # unknown -> assume smallest (v7x-class) VMEM
        cap = 64 * 1024 * 1024
    if cap >= 100 * 1024 * 1024:           # v5e / v6e: 128 MiB physical
        return 72 * 1024 * 1024, 96 * 1024 * 1024
    return 28 * 1024 * 1024, 48 * 1024 * 1024   # v7x: 64 MiB physical


def _soft_hist_tanh_kernel(ca_ref, x_ref, o_ref, *, bk, s_half, s_delta):
    """General path (C == 1 or C == nbins), exact tanh identity.

    out[j,i] += 0.5 * (tanh(s/2*x - cA[j]) - tanh(s/2*x - cA[j] - s*delta/2))
    with cA = (sigma/2)*c - sigma*delta/4 folded on the host.
    """
    # grid = (bins_tiles, value_tiles, batch_blocks); batch (reduction) is last.
    @pl.when(pl.program_id(2) == 0)
    def _init():
        o_ref[...] = jnp.zeros_like(o_ref)

    tb, tn = o_ref.shape
    # Hoist the (tb,1)->(tb,tn) lane broadcast of the folded centers out of the
    # batch loop (broadcast_in_dim is not CSE'd by JAX).
    ca = jnp.broadcast_to(ca_ref[...], (tb, tn))

    acc = jnp.zeros((tb, tn), jnp.float32)
    for i in range(bk):                          # static unroll over the batch block
        a1 = s_half * x_ref[i].astype(jnp.float32) - ca   # (tb, tn) via broadcast
        acc += jnp.tanh(a1) - jnp.tanh(a1 - s_delta)
    o_ref[...] += 0.5 * acc                      # one accumulator RMW per grid step


def _soft_hist_exp_kernel(ec_ref, eci_ref, x_ref, o_ref, *, bk, sigma, shift,
                          cosh_sh, sinh_sh, clamp):
    """C == 1 fast path via the separable identity

        sigmoid(s(d+h)) - sigmoid(s(d-h)) = sinh(s*h) / (cosh(s*d) + cosh(s*h))

    with cosh(s*d) = ex*eci + exi*ec where ex/exi = exp(+-s*(x-shift)) are thin
    (1, tile_n) vectors recomputed per batch element (EUP cost amortized over
    tile_bins) and ec/eci = 0.5*exp(+-s*(c-shift)) precomputed columns.
    -> one reciprocal chain per output element instead of two tanh.
    """
    @pl.when(pl.program_id(2) == 0)
    def _init():
        o_ref[...] = jnp.zeros_like(o_ref)

    tb, tn = o_ref.shape
    # Hoist the lane broadcasts of the center columns out of the batch loop.
    ec = jnp.broadcast_to(ec_ref[...], (tb, tn))     # 0.5*exp(+s*(c-shift))
    eci = jnp.broadcast_to(eci_ref[...], (tb, tn))   # 0.5*exp(-s*(c-shift))

    acc = jnp.zeros((tb, tn), jnp.float32)
    for i in range(bk):                              # static unroll over the batch block
        zx = jnp.clip(sigma * (x_ref[i].astype(jnp.float32) - shift), -clamp, clamp)
        ex = jnp.exp(zx)                             # (1, tn): thin slab, cheap
        exi = jnp.exp(-zx)
        denom = ex * eci + exi * ec + cosh_sh        # = cosh(s*(x-c)) + cosh(s*delta/2)
        # Exact divide keeps full f32 accuracy; pl.reciprocal(denom, approx=True)
        # (+ one Newton step) is a further EUP/VALU trade when ~1e-4 rel error is OK.
        acc += 1.0 / denom
    o_ref[...] += sinh_sh * acc                      # sinh(s*delta/2) applied once per step


def soft_histogram(x, *, bins, vmin, vmax, sigma):
    """Pallas port of SoftHistogram.forward.

    x: (B, C, N) with C in {1, N} (required by the torch broadcast).
    Returns (1, N, N) float32 (torch keeps the leading size-1 broadcast axis).
    NOTE: mirroring the torch code, the number of bins/centers is x.shape[2]
    while `delta` comes from the `bins` argument.
    """
    b_dim, c_dim, n = x.shape
    nbins = n
    sigma = float(sigma)
    delta = float(vmax - vmin) / float(bins)
    if c_dim not in (1, nbins):
        raise ValueError(f"C must be 1 or {nbins} (got {c_dim}) to mirror the "
                         "torch broadcast")

    # ---- padding: lane-dense value axis, sublane-aligned bins axis ----------
    n_pad = _round_up(n, _LANE)
    nb_pad = _round_up(nbins, _SUBLANE)

    # ---- VMEM-budgeted tile selection ---------------------------------------
    budget, vmem_limit = _vmem_budget()
    # Bytes per (tile_bins x tile_n) element kept live: output double-buffer (2)
    # + ~5 full-tile body temporaries (+ x double-buffer when C == N, Bk == 1).
    per_elem = 4 * (2 + 5 + (0 if c_dim == 1 else 2))
    budget_elems = max(budget // per_elem, _SUBLANE * _LANE)
    tile_bins = _largest_tile(
        nb_pad, _SUBLANE, min(512, nb_pad, max(_SUBLANE, budget_elems // _LANE)))
    tile_n = _largest_tile(
        n_pad, _LANE, min(2048, n_pad, max(_LANE, budget_elems // tile_bins)))
    # v7x has 2 TensorCores: make sure there are >= 2 parallel tiles if possible.
    if (nb_pad // tile_bins) * (n_pad // tile_n) < 2:
        if tile_bins > _SUBLANE:
            tile_bins = _largest_tile(nb_pad, _SUBLANE, tile_bins // 2)
        elif tile_n > _LANE:
            tile_n = _largest_tile(n_pad, _LANE, tile_n // 2)
    bins_tiles = nb_pad // tile_bins
    n_tiles = n_pad // tile_n

    # ---- batch blocking (the reduction axis) --------------------------------
    bk = next(k for k in ((8, 4, 2, 1) if c_dim == 1 else (1,)) if b_dim % k == 0)
    b_blocks = b_dim // bk

    # ---- pad x ---------------------------------------------------------------
    pad_c = 0 if c_dim == 1 else nb_pad - c_dim
    if pad_c or n_pad != n:
        x = jnp.pad(x, ((0, 0), (0, pad_c), (0, n_pad - n)))

    # ---- host-side constants -------------------------------------------------
    centers = float(vmin) + delta * (jnp.arange(nb_pad, dtype=jnp.float32) + 0.5)
    sh = 0.5 * sigma * delta                        # sigma * delta / 2
    shift = 0.5 * (float(vmin) + float(vmax))       # recenter exps around mid-range
    c_lo = float(vmin) + 0.5 * delta
    c_hi = float(vmin) + delta * (nb_pad - 0.5)     # includes padded bin rows
    max_zc = abs(sigma) * max(abs(c_lo - shift), abs(c_hi - shift))
    use_exp = (c_dim == 1) and (max_zc + abs(sh) <= _EXP_SAFE_Z)

    # ---- grid / specs --------------------------------------------------------
    grid = (bins_tiles, n_tiles, b_blocks)
    col_spec = pl.BlockSpec((tile_bins, 1), lambda bi, ni, bki: (bi, 0))
    out_spec = pl.BlockSpec((tile_bins, tile_n), lambda bi, ni, bki: (bi, ni))
    if c_dim == 1:
        x_spec = pl.BlockSpec((bk, 1, tile_n), lambda bi, ni, bki: (bki, 0, ni))
    else:
        x_spec = pl.BlockSpec((bk, tile_bins, tile_n),
                              lambda bi, ni, bki: (bki, bi, ni))
    cparams = pltpu.CompilerParams(
        dimension_semantics=("parallel", "parallel", "arbitrary"),
        vmem_limit_bytes=vmem_limit)

    work = b_dim * nbins * n
    io_bytes = int(4 * (x.size + nb_pad * n_pad + 2 * nb_pad))

    if use_exp:
        zc = jnp.clip(sigma * (centers - shift), -_EXP_CLAMP, _EXP_CLAMP)[:, None]
        ec = (0.5 * jnp.exp(zc)).astype(jnp.float32)
        eci = (0.5 * jnp.exp(-zc)).astype(jnp.float32)
        kernel = functools.partial(
            _soft_hist_exp_kernel, bk=bk, sigma=sigma, shift=shift,
            cosh_sh=float(math.cosh(sh)), sinh_sh=float(math.sinh(sh)),
            clamp=_EXP_CLAMP)
        cost = pl.CostEstimate(flops=8 * work, transcendentals=work,
                               bytes_accessed=io_bytes)
        out = pl.pallas_call(
            kernel,
            out_shape=jax.ShapeDtypeStruct((nb_pad, n_pad), jnp.float32),
            grid=grid,
            in_specs=[col_spec, col_spec, x_spec],
            out_specs=out_spec,
            compiler_params=cparams,
            cost_estimate=cost,
        )(ec, eci, x)
    else:
        ca = (0.5 * sigma * centers - 0.25 * sigma * delta)[:, None].astype(jnp.float32)
        kernel = functools.partial(
            _soft_hist_tanh_kernel, bk=bk, s_half=0.5 * sigma,
            s_delta=0.5 * sigma * delta)
        cost = pl.CostEstimate(flops=6 * work, transcendentals=2 * work,
                               bytes_accessed=io_bytes)
        out = pl.pallas_call(
            kernel,
            out_shape=jax.ShapeDtypeStruct((nb_pad, n_pad), jnp.float32),
            grid=grid,
            in_specs=[col_spec, x_spec],
            out_specs=out_spec,
            compiler_params=cparams,
            cost_estimate=cost,
        )(ca, x)

    return out[:nbins, :n][None]


def _reference(x, *, bins, vmin, vmax, sigma):
    """Pure-JAX mirror of the torch forward."""
    n = x.shape[2]
    delta = float(vmax - vmin) / float(bins)
    centers = float(vmin) + delta * (jnp.arange(n, dtype=jnp.float32) + 0.5)
    d = x[None].astype(jnp.float32) - centers[:, None]          # (1, B, N, N)
    y = (jax.nn.sigmoid(sigma * (d + delta / 2))
         - jax.nn.sigmoid(sigma * (d - delta / 2)))
    return y.sum(axis=1)                                        # (1, N, N)


if __name__ == "__main__":
    bins, vmin, vmax, sigma = 16, 0.0, 1.0, 25.0
    k1, k2, k3 = jax.random.split(jax.random.PRNGKey(0), 3)

    def _check(x, shape):
        y = jax.block_until_ready(
            soft_histogram(x, bins=bins, vmin=vmin, vmax=vmax, sigma=sigma))
        r = _reference(x, bins=bins, vmin=vmin, vmax=vmax, sigma=sigma)
        return (y.shape == r.shape == shape) and bool(
            jnp.allclose(y, r, atol=2e-5, rtol=2e-5))

    ok = True

    # Case 1: C == 1 (usual call pattern) -> separable-exp fast path, Bk = 2.
    x1 = jax.random.uniform(k1, (2, 1, 16), dtype=jnp.float32,
                            minval=vmin, maxval=vmax)
    ok &= _check(x1, (1, 16, 16))

    # Case 2: C == N (the other shape the torch broadcast admits) -> tanh path.
    x2 = jax.random.uniform(k2, (2, 16, 16), dtype=jnp.float32,
                            minval=vmin, maxval=vmax)
    ok &= _check(x2, (1, 16, 16))

    # Case 3: non-power-of-two N (exercises value/bins padding + tile split),
    # odd batch and slightly out-of-range values; with bins != N the centers
    # run far past vmax (faithful to the torch code), so this takes the tanh
    # fallback for C == 1.
    x3 = jax.random.uniform(k3, (3, 1, 160), dtype=jnp.float32,
                            minval=vmin - 0.2, maxval=vmax + 0.2)
    ok &= _check(x3, (1, 160, 160))

    assert ok
    print("KERNEL_OK")
</pallas_src>

<mosaic_0001>
module attributes {stable_mosaic.version = 11 : i64} {
  func.func @_soft_hist_exp_kernel(%arg0: i32, %arg1: i32, %arg2: i32, %arg3: memref<8x1xf32, #tpu.memory_space<vmem>>, %arg4: memref<8x1xf32, #tpu.memory_space<vmem>>, %arg5: memref<2x1x128xf32, #tpu.memory_space<vmem>>, %arg6: memref<8x128xf32, #tpu.memory_space<vmem>>) attributes {dimension_semantics = [#tpu.dimension_semantics<parallel>, #tpu.dimension_semantics<parallel>, #tpu.dimension_semantics<arbitrary>], iteration_bounds = array<i64: 2, 1, 1>, scalar_prefetch = 0 : i64, scratch_operands = 0 : i64, tpu.core_type = #tpu.core_type<tc>, window_params = [{transform_indices = @transform_0, window_bounds = array<i64: 8, 1>}, {transform_indices = @transform_1, window_bounds = array<i64: 8, 1>}, {transform_indices = @transform_2, window_bounds = array<i64: 2, 1, 128>}, {transform_indices = @transform_3, window_bounds = array<i64: 8, 128>}]} {
    %c0_i32 = arith.constant 0 : i32
    %0 = arith.cmpi eq, %arg2, %c0_i32 : i32
    %1 = arith.extui %0 : i1 to i32
    %c0_i32_0 = arith.constant 0 : i32
    %2 = arith.cmpi ne, %1, %c0_i32_0 : i32
    scf.if %2 {
      %cst_28 = arith.constant 0.000000e+00 : f32
      %63 = vector.broadcast %cst_28 : f32 to vector<8x128xf32>
      %c0_29 = arith.constant 0 : index
      %c0_30 = arith.constant 0 : index
      %64 = vector.load %arg6[%c0_29, %c0_30] : memref<8x128xf32, #tpu.memory_space<vmem>>, vector<8x128xf32>
      tpu.vector_store %arg6[%c0_29, %c0_30], %63 {strides = array<i32>} : memref<8x128xf32, #tpu.memory_space<vmem>>, vector<8x128xf32>,
    } else {
    }
    %c0 = arith.constant 0 : index
    %c0_1 = arith.constant 0 : index
    %3 = vector.load %arg3[%c0, %c0_1] : memref<8x1xf32, #tpu.memory_space<vmem>>, vector<8x1xf32>
    %4 = vector.shape_cast %3 : vector<8x1xf32> to vector<8x1xf32>
    %5 = vector.broadcast %4 : vector<8x1xf32> to vector<8x128xf32>
    %c0_2 = arith.constant 0 : index
    %c0_3 = arith.constant 0 : index
    %6 = vector.load %arg4[%c0_2, %c0_3] : memref<8x1xf32, #tpu.memory_space<vmem>>, vector<8x1xf32>
    %7 = vector.shape_cast %6 : vector<8x1xf32> to vector<8x1xf32>
    %8 = vector.broadcast %7 : vector<8x1xf32> to vector<8x128xf32>
    %cst = arith.constant 0.000000e+00 : f32
    %9 = vector.broadcast %cst : f32 to vector<8x128xf32>
    %c0_4 = arith.constant 0 : index
    %c0_5 = arith.constant 0 : index
    %c0_6 = arith.constant 0 : index
    %10 = vector.load %arg5[%c0_4, %c0_5, %c0_6] : memref<2x1x128xf32, #tpu.memory_space<vmem>>, vector<1x1x128xf32>
    %11 = vector.shape_cast %10 : vector<1x1x128xf32> to vector<1x128xf32>
    %cst_7 = arith.constant 5.000000e-01 : f32
    %12 = vector.broadcast %cst_7 : f32 to vector<1x128xf32>
    %13 = arith.subf %11, %12 : vector<1x128xf32>
    %cst_8 = arith.constant 2.500000e+01 : f32
    %14 = vector.broadcast %cst_8 : f32 to vector<1x128xf32>
    %15 = arith.mulf %14, %13 : vector<1x128xf32>
    %cst_9 = arith.constant -8.000000e+01 : f32
    %cst_10 = arith.constant 8.000000e+01 : f32
    %16 = vector.broadcast %cst_9 : f32 to vector<1x128xf32>
    %17 = arith.maximumf %16, %15 : vector<1x128xf32>
    %18 = vector.broadcast %cst_10 : f32 to vector<1x128xf32>
    %19 = arith.minimumf %18, %17 : vector<1x128xf32>
    %20 = math.exp %19 : vector<1x128xf32>
    %cst_11 = arith.constant 0.000000e+00 : f32
    %21 = vector.broadcast %cst_11 : f32 to vector<1x128xf32>
    %22 = arith.subf %21, %19 : vector<1x128xf32>
    %23 = math.exp %22 : vector<1x128xf32>
    %24 = vector.broadcast %20 : vector<1x128xf32> to vector<8x128xf32>
    %25 = arith.mulf %24, %8 : vector<8x128xf32>
    %26 = vector.broadcast %23 : vector<1x128xf32> to vector<8x128xf32>
    %27 = arith.mulf %26, %5 : vector<8x128xf32>
    %28 = arith.addf %25, %27 : vector<8x128xf32>
    %cst_12 = arith.constant 1.32101703 : f32
    %29 = vector.broadcast %cst_12 : f32 to vector<8x128xf32>
    %30 = arith.addf %28, %29 : vector<8x128xf32>
    %cst_13 = arith.constant 1.000000e+00 : f32
    %31 = vector.broadcast %cst_13 : f32 to vector<8x128xf32>
    %32 = arith.divf %31, %30 : vector<8x128xf32>
    %33 = arith.addf %9, %32 : vector<8x128xf32>
    %c1 = arith.constant 1 : index
    %c0_14 = arith.constant 0 : index
    %c0_15 = arith.constant 0 : index
    %34 = vector.load %arg5[%c1, %c0_14, %c0_15] : memref<2x1x128xf32, #tpu.memory_space<vmem>>, vector<1x1x128xf32>
    %35 = vector.shape_cast %34 : vector<1x1x128xf32> to vector<1x128xf32>
    %cst_16 = arith.constant 5.000000e-01 : f32
    %36 = vector.broadcast %cst_16 : f32 to vector<1x128xf32>
    %37 = arith.subf %35, %36 : vector<1x128xf32>
    %cst_17 = arith.constant 2.500000e+01 : f32
    %38 = vector.broadcast %cst_17 : f32 to vector<1x128xf32>
    %39 = arith.mulf %38, %37 : vector<1x128xf32>
    %cst_18 = arith.constant -8.000000e+01 : f32
    %cst_19 = arith.constant 8.000000e+01 : f32
    %40 = vector.broadcast %cst_18 : f32 to vector<1x128xf32>
    %41 = arith.maximumf %40, %39 : vector<1x128xf32>
    %42 = vector.broadcast %cst_19 : f32 to vector<1x128xf32>
    %43 = arith.minimumf %42, %41 : vector<1x128xf32>
    %44 = math.exp %43 : vector<1x128xf32>
    %cst_20 = arith.constant 0.000000e+00 : f32
    %45 = vector.broadcast %cst_20 : f32 to vector<1x128xf32>
    %46 = arith.subf %45, %43 : vector<1x128xf32>
    %47 = math.exp %46 : vector<1x128xf32>
    %48 = vector.broadcast %44 : vector<1x128xf32> to vector<8x128xf32>
    %49 = arith.mulf %48, %8 : vector<8x128xf32>
    %50 = vector.broadcast %47 : vector<1x128xf32> to vector<8x128xf32>
    %51 = arith.mulf %50, %5 : vector<8x128xf32>
    %52 = arith.addf %49, %51 : vector<8x128xf32>
    %cst_21 = arith.constant 1.32101703 : f32
    %53 = vector.broadcast %cst_21 : f32 to vector<8x128xf32>
    %54 = arith.addf %52, %53 : vector<8x128xf32>
    %cst_22 = arith.constant 1.000000e+00 : f32
    %55 = vector.broadcast %cst_22 : f32 to vector<8x128xf32>
    %56 = arith.divf %55, %54 : vector<8x128xf32>
    %57 = arith.addf %33, %56 : vector<8x128xf32>
    %c0_23 = arith.constant 0 : index
    %c0_24 = arith.constant 0 : index
    %58 = vector.load %arg6[%c0_23, %c0_24] : memref<8x128xf32, #tpu.memory_space<vmem>>, vector<8x128xf32>
    %cst_25 = arith.constant 0.863183737 : f32
    %59 = vector.broadcast %cst_25 : f32 to vector<8x128xf32>
    %60 = arith.mulf %59, %57 : vector<8x128xf32>
    %61 = arith.addf %58, %60 : vector<8x128xf32>
    %c0_26 = arith.constant 0 : index
    %c0_27 = arith.constant 0 : index
    %62 = vector.load %arg6[%c0_26, %c0_27] : memref<8x128xf32, #tpu.memory_space<vmem>>, vector<8x128xf32>
    tpu.vector_store %arg6[%c0_26, %c0_27], %61 {strides = array<i32>} : memref<8x128xf32, #tpu.memory_space<vmem>>, vector<8x128xf32>,
    return
  }
  func.func @transform_0(%arg0: i32, %arg1: i32, %arg2: i32) -> (i32, i32) {
    %c0_i32 = arith.constant 0 : i32
    %c0_i32_0 = arith.constant 0 : i32
    return %arg0, %c0_i32 : i32, i32
  }
  func.func @transform_1(%arg0: i32, %arg1: i32, %arg2: i32) -> (i32, i32) {
    %c0_i32 = arith.constant 0 : i32
    %c0_i32_0 = arith.constant 0 : i32
    return %arg0, %c0_i32 : i32, i32
  }
  func.func @transform_2(%arg0: i32, %arg1: i32, %arg2: i32) -> (i32, i32, i32) {
    %c0_i32 = arith.constant 0 : i32
    %c0_i32_0 = arith.constant 0 : i32
    return %arg2, %c0_i32, %arg1 : i32, i32, i32
  }
  func.func @transform_3(%arg0: i32, %arg1: i32, %arg2: i32) -> (i32, i32) {
    %c0_i32 = arith.constant 0 : i32
    return %arg0, %arg1 : i32, i32
  }
}

</mosaic_0001>

<llo_original>
// kernel: tpu_custom_call.1
$region0: #{tpu_custom_call.1}
  #allocation0 [shape = 'u32[]', space=smem, size = 0x4, offset = 0x4, fixed_abs, tag = 'smem constant byte address 0x4 - core index']
  #allocation1 [shape = 'u32[144,128]{1,0:T(1,128)}', space=vmem, size = 0x12000, scoped, tag = 'internal scratch']
  %s0 = inlined_call_operand.vmem [shape: f32[16,1], index: 0, kind: input, shape index: {}]
  %s1 = inlined_call_operand.vmem [shape: f32[16,1], index: 1, kind: input, shape index: {}]
  %s2 = inlined_call_operand.vmem [shape: f32[2,1,128], index: 2, kind: input, shape index: {}]
  %s3 = inlined_call_operand.hbm [shape: f32[16,128], index: 3, kind: output, shape index: {}]
  %s4 = sld [smem:[#allocation0]]
  $region49: #{tpu_custom_call.1} parent=0
    _
  %s6 = ssub.s32 1, %s4
  %s7 = scalar_select 0, %s6, %s4
  $region1: #{tpu_custom_call.1} parent=0
    #allocation2 [shape = 'u8[8192]{0}', space=vmem, size = 0x2000, scoped, tag = 'output window, operand 0']
    #allocation3 [shape = 's32[2]{0}', space=sflag, size = 0x8, scoped, tag = 'scoped memory for tpu_custom_call.1']
    %8 = vsyncpa [#allocation3], 0
    %s9 = scalar_lea.sflag [#allocation3], 1
    %10 = vsyncpa %s9, 0
    loop: start=0, step=1, limit=4
    $region2: #{tpu_custom_call.1} parent=1 // loop_pre_header
      _
    $region3: #{tpu_custom_call.1} parent=1 // loop_header
      %s12 = sphi 0, %s16
      %p13 = scmp.ge.s32.totalorder %s12, 4
      %s19 = sphi 0, %s38
      %s20 = sphi 0, %s34
      %s21 = sphi 0, %s30
      %s22 = sphi 0, %s19
      %s23 = sphi 0, %s20
      %s24 = sphi 0, %s21
      %s25 = sphi 0, %s22
      %s26 = sphi 0, %s23
      %s27 = sphi 0, %s24
      %s41 = sphi 0, %s43
      %s44 = sphi 0, %s41
      %s45 = sphi 0, %s44
      %s61 = sphi 0, %s45
      %s67 = sphi 0, %s69
      %s70 = sphi 0, %s67
      %s71 = sphi 0, %s70
      %s87 = sphi 0, %s71
      %s95 = sphi 0, %s97
      %s98 = sphi 0, %s95
      %s99 = sphi 0, %s98
      %s115 = sphi 0, %s99
      %s123 = sphi 0, %s125
      %s126 = sphi 0, %s123
      %s127 = sphi 0, %s126
      %s143 = sphi 0, %s127
    $region4: #{tpu_custom_call.1} parent=1 // loop_header_branch
      %15 = sbr.rel (%p13) target = $region8
    $region5: #{tpu_custom_call.1} parent=1 // loop_body
      %s17 = ssub.s32 %s12, 1
      %s18 = ssub.s32 %s12, 2
      %s28 = sadd.s32 1, %s21
      %p29 = scmp.ge.s32.totalorder %s28, 1
      %s30 = scalar_select %p29, 0, %s28
      %s31 = sadd.s32 1, %s20
      %s32 = scalar_select %p29, %s31, %s20
      %p33 = scmp.ge.s32.totalorder %s32, 1
      %s34 = scalar_select %p33, 0, %s32
      %s35 = sadd.s32 1, %s19
      %s36 = scalar_select %p33, %s35, %s19
      %p37 = scmp.ge.s32.totalorder %s36, 2
      %s38 = scalar_select %p37, 0, %s36
      %s39 = ssub.s32 %s19, %s38
      %p40 = scmp.eq.s32.totalorder %s39, 0
      %s42 = sadd.s32 %s41, 1
      %s43 = scalar_select %p40, %s41, %s42
      %p46 = pneg %p40
      %p47 = scmp.eq.s32.totalorder %s12, 1
      %p48 = por %p46, %p47
      %p49 = scmp.ne.s32.totalorder %s41, %s44
      %p50 = scmp.eq.s32.totalorder %s12, 0
      %p51 = por %p49, %p50
      %p52 = scmp.ne.s32.totalorder %s41, %s44
      %p53 = scmp.eq.s32.totalorder %s17, 1
      %p54 = por %p52, %p53
      %p55 = scmp.ne.s32.totalorder %s44, %s45
      %p56 = scmp.eq.s32.totalorder %s17, 0
      %p57 = por %p55, %p56
      %p58 = scmp.ne.s32.totalorder %s44, %s45
      %p59 = scmp.eq.s32.totalorder %s18, 1
      %p60 = por %p58, %p59
      %p62 = scmp.ne.s32.totalorder %s45, %s61
      %p63 = scmp.eq.s32.totalorder %s18, 0
      %p64 = por %p62, %p63
      %s65 = ssub.s32 %s19, %s38
      %p66 = scmp.eq.s32.totalorder %s65, 0
      %s68 = sadd.s32 %s67, 1
      %s69 = scalar_select %p66, %s67, %s68
      %p72 = pneg %p66
      %p73 = scmp.eq.s32.totalorder %s12, 1
      %p74 = por %p72, %p73
      %p75 = scmp.ne.s32.totalorder %s67, %s70
      %p76 = scmp.eq.s32.totalorder %s12, 0
      %p77 = por %p75, %p76
      %p78 = scmp.ne.s32.totalorder %s67, %s70
      %p79 = scmp.eq.s32.totalorder %s17, 1
      %p80 = por %p78, %p79
      %p81 = scmp.ne.s32.totalorder %s70, %s71
      %p82 = scmp.eq.s32.totalorder %s17, 0
      %p83 = por %p81, %p82
      %p84 = scmp.ne.s32.totalorder %s70, %s71
      %p85 = scmp.eq.s32.totalorder %s18, 1
      %p86 = por %p84, %p85
      %p88 = scmp.ne.s32.totalorder %s71, %s87
      %p89 = scmp.eq.s32.totalorder %s18, 0
      %p90 = por %p88, %p89
      %s91 = ssub.s32 %s21, %s30
      %s92 = ssub.s32 %s20, %s34
      %s93 = sor.u32 %s91, %s92
      %p94 = scmp.eq.s32.totalorder %s93, 0
      %s96 = sadd.s32 %s95, 1
      %s97 = scalar_select %p94, %s95, %s96
      %p100 = pneg %p94
      %p101 = scmp.eq.s32.totalorder %s12, 1
      %p102 = por %p100, %p101
      %p103 = scmp.ne.s32.totalorder %s95, %s98
      %p104 = scmp.eq.s32.totalorder %s12, 0
      %p105 = por %p103, %p104
      %p106 = scmp.ne.s32.totalorder %s95, %s98
      %p107 = scmp.eq.s32.totalorder %s17, 1
      %p108 = por %p106, %p107
      %p109 = scmp.ne.s32.totalorder %s98, %s99
      %p110 = scmp.eq.s32.totalorder %s17, 0
      %p111 = por %p109, %p110
      %p112 = scmp.ne.s32.totalorder %s98, %s99
      %p113 = scmp.eq.s32.totalorder %s18, 1
      %p114 = por %p112, %p113
      %p116 = scmp.ne.s32.totalorder %s99, %s115
      %p117 = scmp.eq.s32.totalorder %s18, 0
      %p118 = por %p116, %p117
      %s119 = ssub.s32 %s19, %s38
      %s120 = ssub.s32 %s20, %s34
      %s121 = sor.u32 %s119, %s120
      %p122 = scmp.eq.s32.totalorder %s121, 0
      %s124 = sadd.s32 %s123, 1
      %s125 = scalar_select %p122, %s123, %s124
      %p128 = pneg %p122
      %p129 = scmp.eq.s32.totalorder %s12, 1
      %p130 = por %p128, %p129
      %p131 = scmp.ne.s32.totalorder %s123, %s126
      %p132 = scmp.eq.s32.totalorder %s12, 0
      %p133 = por %p131, %p132
      %p134 = scmp.ne.s32.totalorder %s123, %s126
      %p135 = scmp.eq.s32.totalorder %s17, 1
      %p136 = por %p134, %p135
      %p137 = scmp.ne.s32.totalorder %s126, %s127
      %p138 = scmp.eq.s32.totalorder %s17, 0
      %p139 = por %p137, %p138
      %p140 = scmp.ne.s32.totalorder %s126, %s127
      %p141 = scmp.eq.s32.totalorder %s18, 1
      %p142 = por %p140, %p141
      %p144 = scmp.ne.s32.totalorder %s127, %s143
      %p145 = scmp.eq.s32.totalorder %s18, 0
      %p146 = por %p144, %p145
      %p147 = scmp.le.s32.totalorder 1, %s12
      %p148 = scmp.lt.s32.totalorder %s12, 3
      %p149 = pnand %p147, %p148
      %p150 = pneg %p149
      // Predicated region
      $region9: #{tpu_custom_call.1} parent=5 // pred_check
        _
      $region10: #{tpu_custom_call.1} parent=5 // pred_check_branch
        %152 = sbr.rel (%p149) target = $region12
      $region11: #{tpu_custom_call.1} parent=5 // pred_region
        %s153 = ssub.s32 %s12, 1
        // Predicated region
        $region13: #{tpu_custom_call.1} parent=11 // pred_check
          %p154 = pneg %p111
        $region14: #{tpu_custom_call.1} parent=11 // pred_check_branch
          %156 = sbr.rel (%p154) target = $region16
        $region15: #{tpu_custom_call.1} parent=11 // pred_region
          %s157 = smul.u32 2, %s24
          %p158 = scmp.lt.s32.totalorder %s157, 1
          %s159 = scalar_select %p158, %s157, 1
          %p160 = scmp.lt.s32.totalorder %s23, 0
          %s161 = scalar_select %p160, %s23, 0
          %s162 = sadd.s32 %s161, %s159
          %s163 = scalar_lea.vmem %s2, %s162
          %s164 = smul.u32 2, %s24
        $region16: #{tpu_custom_call.1} parent=11 // pred_fallthru
          _
      $region12: #{tpu_custom_call.1} parent=5 // pred_fallthru
        _
      %p165 = scmp.lt.s32.totalorder %s12, 2
      // Predicated region
      $region17: #{tpu_custom_call.1} parent=5 // pred_check
        %p166 = pneg %p165
      $region18: #{tpu_custom_call.1} parent=5 // pred_check_branch
        %168 = sbr.rel (%p166) target = $region20
      $region19: #{tpu_custom_call.1} parent=5 // pred_region
        // Predicated region
        $region21: #{tpu_custom_call.1} parent=19 // pred_check
          %p169 = pneg %p51
        $region22: #{tpu_custom_call.1} parent=19 // pred_check_branch
          %171 = sbr.rel (%p169) target = $region24
        $region23: #{tpu_custom_call.1} parent=19 // pred_region
          %p172 = scmp.lt.s32.totalorder %s19, 1
          %s173 = scalar_select %p172, %s19, 1
          %s174 = smul.addr %s173, 8
          %s175 = scalar_lea.vmem %s0, %s174
        $region24: #{tpu_custom_call.1} parent=19 // pred_fallthru
          _
        // Predicated region
        $region25: #{tpu_custom_call.1} parent=19 // pred_check
          %p176 = pneg %p77
        $region26: #{tpu_custom_call.1} parent=19 // pred_check_branch
          %178 = sbr.rel (%p176) target = $region28
        $region27: #{tpu_custom_call.1} parent=19 // pred_region
          %p179 = scmp.lt.s32.totalorder %s19, 1
          %s180 = scalar_select %p179, %s19, 1
          %s181 = smul.addr %s180, 8
          %s182 = scalar_lea.vmem %s1, %s181
        $region28: #{tpu_custom_call.1} parent=19 // pred_fallthru
          _
      $region20: #{tpu_custom_call.1} parent=5 // pred_fallthru
        _
      %p183 = scmp.le.s32.totalorder 1, %s12
      %p184 = scmp.lt.s32.totalorder %s12, 3
      %p185 = pnand %p183, %p184
      %p186 = pneg %p185
      // Predicated region
      $region29: #{tpu_custom_call.1} parent=5 // pred_check
        _
      $region30: #{tpu_custom_call.1} parent=5 // pred_check_branch
        %188 = sbr.rel (%p185) target = $region32
      $region31: #{tpu_custom_call.1} parent=5 // pred_region
        %s189 = ssub.s32 %s12, 1
        %p190 = scmp.lt.s32.totalorder %s22, 1
        %s191 = scalar_select %p190, %s22, 1
        %s192 = smul.addr %s191, 8
        %s193 = scalar_lea.vmem %s0, %s192
        %p194 = pneg %p57
        %p195 = pneg %p54
        %p196 = scmp.lt.s32.totalorder %s22, 1
        %s197 = scalar_select %p196, %s22, 1
        %s198 = smul.addr %s197, 8
        %s199 = scalar_lea.vmem %s1, %s198
        %p200 = pneg %p83
        %p201 = pneg %p80
        %s202 = smul.u32 2, %s24
        %p203 = scmp.lt.s32.totalorder %s202, 1
        %s204 = scalar_select %p203, %s202, 1
        %p205 = scmp.lt.s32.totalorder %s23, 0
        %s206 = scalar_select %p205, %s23, 0
        %s207 = sadd.s32 %s206, %s204
        %s208 = scalar_lea.vmem %s2, %s207
        %p209 = pneg %p111
        %p210 = pneg %p108
        %p211 = pneg %p139
        %p212 = pneg %p136
        %s213 = sand.u32 %s126, 1
        %s214 = scalar_lea.sflag [#allocation3], %s213
        %s215 = sand.u32 %s126, 1
        %s216 = smul.addr %s215, 8
        %s217 = scalar_lea.vmem [#allocation2], %s216
        %p218 = scmp.lt.s32.totalorder %s22, 1
        %s219 = scalar_select %p218, %s22, 1
        %s220 = smul.addr %s219, 8
        %s221 = scalar_lea.vmem %s0, %s220
        %p222 = scmp.lt.s32.totalorder %s22, 1
        %s223 = scalar_select %p222, %s22, 1
        %s224 = smul.addr %s223, 8
        %s225 = scalar_lea.vmem %s1, %s224
        %s226 = smul.u32 2, %s24
        %p227 = scmp.lt.s32.totalorder %s226, 1
        %s228 = scalar_select %p227, %s226, 1
        %p229 = scmp.lt.s32.totalorder %s23, 0
        %s230 = scalar_select %p229, %s23, 0
        %s231 = sadd.s32 %s230, %s228
        %s232 = scalar_lea.vmem %s2, %s231
        %s233 = smul.u32 2, %s24
        %p234 = scmp.eq.s32.totalorder %s24, 0
        // Predicated region
        $region33: #{tpu_custom_call.1} parent=31 // pred_check
          %p235 = pneg %p234
        $region34: #{tpu_custom_call.1} parent=31 // pred_check_branch
          %237 = sbr.rel (%p235) target = $region36
        $region35: #{tpu_custom_call.1} parent=31 // pred_region
          %238 = vst [vmem:[%s217] sm:$0xff] 0.0
        $region36: #{tpu_custom_call.1} parent=31 // pred_fallthru
          _
        %v239 = vld [vmem:[%s221] sm:$0xff]
        %241 = vset.pattern.permute.xlu0 0
        %242 = vperm.xlu0 %241, %v239
        %v243 = vpop.permute.xlu0 %242
        %v245 = vld [vmem:[%s225] sm:$0xff]
        %247 = vset.pattern.permute.xlu0 0
        %248 = vperm.xlu0 %247, %v245
        %v249 = vpop.permute.xlu0 %248
        %v251 = vld [vmem:[%s232] sm:$0x1]
        %v252 = vsub.f32 %v251, 0.5
        %v253 = vmul.f32 %v252, 25.0
        %v254 = vmax.f32 %v253, -80.0
        %v255 = vmin.f32 %v254, 80.0
        %v256 = vmul.f32 %v255, 1.442695
        %v257 = vpow.pop %v256
        %v258 = vsub.f32 0.0, %v255
        %v259 = vmul.f32 %v258, 1.442695
        %v260 = vpow.pop %v259
        %v262 = vlaneseq
        %v263 = vshrl.u32 %v262, 7
        %v264 = vsub.s32 0, %v263
        %v265 = vrot.slane %v257, %v264
        %v267 = vmul.f32 %v265, %v249
        %v269 = vlaneseq
        %v270 = vshrl.u32 %v269, 7
        %v271 = vsub.s32 0, %v270
        %v272 = vrot.slane %v260, %v271
        %v274 = vmul.f32 %v272, %v243
        %v275 = vadd.f32 %v267, %v274
        %v276 = vadd.f32 %v275, 1.321017
        %v277 = vrcp.pop %v276
        %v278 = vmul.f32 1.0, %v277
        %v279 = vadd.f32 %v278, 0.0
        %s280 = scalar_lea.vmem %s232, 1
        %v281 = vld [vmem:[%s280] sm:$0x1]
        %v282 = vsub.f32 %v281, 0.5
        %v283 = vmul.f32 %v282, 25.0
        %v284 = vmax.f32 %v283, -80.0
        %v285 = vmin.f32 %v284, 80.0
        %v286 = vmul.f32 %v285, 1.442695
        %v287 = vpow.pop %v286
        %v288 = vsub.f32 0.0, %v285
        %v289 = vmul.f32 %v288, 1.442695
        %v290 = vpow.pop %v289
        %v292 = vlaneseq
        %v293 = vshrl.u32 %v292, 7
        %v294 = vsub.s32 0, %v293
        %v295 = vrot.slane %v287, %v294
        %v297 = vmul.f32 %v295, %v249
        %v299 = vlaneseq
        %v300 = vshrl.u32 %v299, 7
        %v301 = vsub.s32 0, %v300
        %v302 = vrot.slane %v290, %v301
        %v304 = vmul.f32 %v302, %v243
        %v305 = vadd.f32 %v297, %v304
        %v306 = vadd.f32 %v305, 1.321017
        %v307 = vrcp.pop %v306
        %v308 = vmul.f32 1.0, %v307
        %v309 = vadd.f32 %v279, %v308
        %v310 = vld [vmem:[%s217] sm:$0xff]
        %v311 = vmul.f32 %v309, 0.86318374
        %v312 = vadd.f32 %v310, %v311
        %313 = vst [vmem:[%s217] sm:$0xff] %v312
        %s314 = sand.u32 %s126, 1
        %s315 = scalar_lea.sflag [#allocation3], %s314
        %s316 = sand.u32 %s126, 1
        %s317 = smul.addr %s316, 8
        %s318 = scalar_lea.vmem [#allocation2], %s317
        // Predicated region
        $region37: #{tpu_custom_call.1} parent=31 // pred_check
          %p319 = pneg %p136
        $region38: #{tpu_custom_call.1} parent=31 // pred_check_branch
          %321 = sbr.rel (%p319) target = $region40
        $region39: #{tpu_custom_call.1} parent=31 // pred_region
          %s323 = ssub.s32 128, 128
          %324 = vsyncadd %s315, %s323
          %s325 = sadd.s32 %s23, %s22
          %s326 = smul.addr %s325, 128
          %s327 = scalar_lea.hbm %s3, %s326
          %s329 = sshll.u32 %s318, 4
          %s330 = int_to_ptr.vmem [resolvable:$true] %s329
          %332 = dma.vmem_to_hbm [thread:$0]  %s330, 128, %s327, %s315
        $region40: #{tpu_custom_call.1} parent=31 // pred_fallthru
          _
      $region32: #{tpu_custom_call.1} parent=5 // pred_fallthru
        _
      %p333 = scmp.le.s32.totalorder 2, %s12
      // Predicated region
      $region41: #{tpu_custom_call.1} parent=5 // pred_check
        %p334 = pneg %p333
      $region42: #{tpu_custom_call.1} parent=5 // pred_check_branch
        %336 = sbr.rel (%p334) target = $region44
      $region43: #{tpu_custom_call.1} parent=5 // pred_region
        %s337 = ssub.s32 %s12, 2
        // Predicated region
        $region45: #{tpu_custom_call.1} parent=43 // pred_check
          %p338 = pneg %p142
        $region46: #{tpu_custom_call.1} parent=43 // pred_check_branch
          %340 = sbr.rel (%p338) target = $region48
        $region47: #{tpu_custom_call.1} parent=43 // pred_region
          %s341 = sand.u32 %s127, 1
          %s342 = scalar_lea.sflag [#allocation3], %s341
          %s343 = sand.u32 %s127, 1
          %s344 = smul.addr %s343, 8
          %s345 = scalar_lea.vmem [#allocation2], %s344
          %346 = dma.done %s342, 128
        $region48: #{tpu_custom_call.1} parent=43 // pred_fallthru
          _
      $region44: #{tpu_custom_call.1} parent=5 // pred_fallthru
        _
    $region6: #{tpu_custom_call.1} parent=1 // loop_footer
      %s16 = sadd.s32 1, %s12
    $region7: #{tpu_custom_call.1} parent=1 // loop_footer_branch
      %11 = sbr.rel target = $region3
    $region8: #{tpu_custom_call.1} parent=1 // loop_exit
      _
    %347 = vsyncpa [#allocation3], 1
    %s348 = scalar_lea.sflag [#allocation3], 1
    %349 = vsyncpa %s348, 1

</llo_original>
